<compile_context>
chip_gen: v6e
topology: v6e:2x2x1
jax: 0.10.0
libtpu: 0.0.40
codegen_flags: <defaults>
</compile_context>

<pallas_src>
import functools
import math

import jax
import jax.numpy as jnp
from jax import lax
from jax.experimental import pallas as pl
from jax.experimental.pallas import tpu as pltpu


_MIB = 1024 * 1024
_VMEM_LIMIT_BYTES = 40 * _MIB      # scoped VMEM limit (safe on v5e/v6e/v7x)
_VMEM_BUDGET_BYTES = 30 * _MIB     # sizing budget with headroom under the limit
_MAX_RESIDENT_BYTES = 16 * _MIB    # cap for keeping `combine` resident in VMEM


def _round_up(x: int, m: int) -> int:
    return ((x + m - 1) // m) * m


def _pad2d(a: jax.Array, rows: int, cols: int, dtype) -> jax.Array:
    """Cast and zero-pad a 2D array up to (rows, cols)."""
    a = a.astype(dtype)
    pr, pc = rows - a.shape[0], cols - a.shape[1]
    if pr or pc:
        a = jnp.pad(a, ((0, pr), (0, pc)))
    return a


def _pick_tile(total: int, cap: int, fits) -> int:
    """Largest multiple of 128 that divides `total`, is <= cap, and fits VMEM."""
    best = 128
    t = 128
    while t <= min(total, cap):
        if total % t == 0 and fits(t):
            best = t
        t += 128
    return best


def _sigmoid(x):
    # sigmoid(x) == 0.5 * (tanh(x / 2) + 1): one EUP push instead of exp + divide.
    return 0.5 * (jnp.tanh(0.5 * x) + 1.0)


# ---------------------------------------------------------------------------
# Kernels
# ---------------------------------------------------------------------------
def _linear_kernel(x_ref, w_ref, c_ref):
    # combine = x @ W.T : contract last axis of x with last axis of W
    # (no explicit transpose -> MXU-friendly, no XLU work).
    c = lax.dot_general(
        x_ref[...], w_ref[...],
        dimension_numbers=(((1,), (1,)), ((), ())),
        preferred_element_type=jnp.float32,
    )
    c_ref[...] = c.astype(c_ref.dtype)


def _gram_resident_kernel(c_ref, out_ref, *, tile):
    # `combine` is fully resident in VMEM; slice the row/col tiles in-kernel.
    i = pl.program_id(0)
    j = pl.program_id(1)
    ci = c_ref[pl.ds(pl.multiple_of(i * tile, 128), tile), :]
    cj = c_ref[pl.ds(pl.multiple_of(j * tile, 128), tile), :]
    logits = lax.dot_general(
        ci, cj,
        dimension_numbers=(((1,), (1,)), ((), ())),
        preferred_element_type=jnp.float32,
    )
    out_ref[...] = _sigmoid(logits).astype(out_ref.dtype)


def _gram_stream_kernel(ci_ref, cj_ref, out_ref):
    logits = lax.dot_general(
        ci_ref[...], cj_ref[...],
        dimension_numbers=(((1,), (1,)), ((), ())),
        preferred_element_type=jnp.float32,
    )
    out_ref[...] = _sigmoid(logits).astype(out_ref.dtype)


# ---------------------------------------------------------------------------
# Forward
# ---------------------------------------------------------------------------
def decoder_forward(node_embed: jax.Array, de_weight: jax.Array, *,
                    use_bf16: bool = True,
                    max_resident_bytes: int = _MAX_RESIDENT_BYTES) -> jax.Array:
    """Pallas implementation of Decoder.forward.

    node_embed: [N, nhid] float32
    de_weight:  [nhid, nhid] float32
    returns adj_out: [N, N] float32
    """
    N, nhid = node_embed.shape
    assert de_weight.shape == (nhid, nhid)
    out_dtype = node_embed.dtype
    compute_dtype = jnp.bfloat16 if use_bf16 else out_dtype
    cbytes = jnp.dtype(compute_dtype).itemsize
    obytes = jnp.dtype(out_dtype).itemsize

    # ---- minimal padding: K and N only up to multiples of 128 ------------
    K = _round_up(nhid, 128)
    Np = _round_up(N, 128)

    if Np == N and K == nhid and node_embed.dtype == compute_dtype:
        x_p = node_embed
    else:
        x_p = _pad2d(node_embed, Np, K, compute_dtype)
    if K == nhid and de_weight.dtype == compute_dtype:
        w_p = de_weight
    else:
        w_p = _pad2d(de_weight, K, K, compute_dtype)

    cparams1 = pltpu.CompilerParams(
        dimension_semantics=("parallel",),
        vmem_limit_bytes=_VMEM_LIMIT_BYTES,
    )
    cparams2 = pltpu.CompilerParams(
        dimension_semantics=("parallel", "parallel"),
        vmem_limit_bytes=_VMEM_LIMIT_BYTES,
    )

    # ---- phase 1: combine = x @ W.T (computed once, tiled over rows) ------
    def _fits_rows(tm):
        # double-buffered x tile + out tile, plus the (K,K) weight (budget 2x).
        return (4 * tm * K + 2 * K * K) * cbytes <= _VMEM_BUDGET_BYTES

    tm_rows = _pick_tile(Np, 1024, _fits_rows)
    combine = pl.pallas_call(
        _linear_kernel,
        out_shape=jax.ShapeDtypeStruct((Np, K), compute_dtype),
        grid_spec=pltpu.PrefetchScalarGridSpec(
            num_scalar_prefetch=0,
            grid=(Np // tm_rows,),
            in_specs=[
                pl.BlockSpec((tm_rows, K), lambda i: (i, 0)),
                pl.BlockSpec((K, K), lambda i: (0, 0)),
            ],
            out_specs=pl.BlockSpec((tm_rows, K), lambda i: (i, 0)),
        ),
        compiler_params=cparams1,
    )(x_p, w_p)

    # ---- phase 2: adj = sigmoid(combine @ combine.T) ----------------------
    resident_bytes = 2 * Np * K * cbytes  # budget both pipeline buffers
    use_resident = resident_bytes <= max_resident_bytes

    if use_resident:
        # combine lives in VMEM once; only the output tiles stream out.
        def _fits_tile(t):
            return resident_bytes + 2 * t * t * obytes <= _VMEM_BUDGET_BYTES

        tile = _pick_tile(Np, 512, _fits_tile)
        adj_p = pl.pallas_call(
            functools.partial(_gram_resident_kernel, tile=tile),
            out_shape=jax.ShapeDtypeStruct((Np, Np), out_dtype),
            grid_spec=pltpu.PrefetchScalarGridSpec(
                num_scalar_prefetch=0,
                grid=(Np // tile, Np // tile),
                in_specs=[pl.BlockSpec((Np, K), lambda i, j: (0, 0))],
                out_specs=pl.BlockSpec((tile, tile), lambda i, j: (i, j)),
            ),
            compiler_params=cparams2,
        )(combine)
    else:
        # streaming fallback: per-tile row/col blocks of combine.
        def _fits_tile(t):
            return 4 * t * K * cbytes + 2 * t * t * obytes <= _VMEM_BUDGET_BYTES

        tile = _pick_tile(Np, 512, _fits_tile)
        adj_p = pl.pallas_call(
            _gram_stream_kernel,
            out_shape=jax.ShapeDtypeStruct((Np, Np), out_dtype),
            grid_spec=pltpu.PrefetchScalarGridSpec(
                num_scalar_prefetch=0,
                grid=(Np // tile, Np // tile),
                in_specs=[
                    pl.BlockSpec((tile, K), lambda i, j: (i, 0)),  # row tile
                    pl.BlockSpec((tile, K), lambda i, j: (j, 0)),  # col tile
                ],
                out_specs=pl.BlockSpec((tile, tile), lambda i, j: (i, j)),
            ),
            compiler_params=cparams2,
        )(combine, combine)

    if Np != N:  # skip the slice (an extra N^2 copy) when no padding was added
        adj_p = adj_p[:N, :N]
    return adj_p


def init_decoder_params(nhid: int, key: jax.Array) -> jax.Array:
    """Matches reset_parameters(): uniform(-stdv, stdv), stdv = 1/sqrt(nhid)."""
    stdv = 1.0 / math.sqrt(nhid)
    return jax.random.uniform(
        key, (nhid, nhid), dtype=jnp.float32, minval=-stdv, maxval=stdv
    )


if __name__ == "__main__":
    key = jax.random.PRNGKey(0)
    k_x, k_w, k_x2, k_w2 = jax.random.split(key, 4)

    # Small shapes consistent with the module: 8 nodes, hidden dim 32.
    N, nhid = 8, 32
    node_embed = jax.random.normal(k_x, (N, nhid), dtype=jnp.float32)
    de_weight = init_decoder_params(nhid, k_w)
    combine_ref = node_embed @ de_weight.T
    adj_ref = jax.nn.sigmoid(combine_ref @ combine_ref.T)

    # f32 path (tight tolerance).
    adj_f32 = jax.block_until_ready(
        decoder_forward(node_embed, de_weight, use_bf16=False))
    assert adj_f32.shape == (N, N)
    assert jnp.allclose(adj_f32, adj_ref, atol=5e-3, rtol=0.0)

    # Default path: bf16 matmul operands, f32 accumulation + f32 sigmoid.
    adj_bf16 = jax.block_until_ready(decoder_forward(node_embed, de_weight))
    assert adj_bf16.shape == (N, N)
    assert jnp.allclose(adj_bf16, adj_ref, atol=3e-2, rtol=0.0)

    # Larger (still small) shape exercises pad-to-128 + multi-node tiling.
    N2, nhid2 = 300, 64
    x2 = jax.random.normal(k_x2, (N2, nhid2), dtype=jnp.float32)
    w2 = init_decoder_params(nhid2, k_w2)
    c2 = x2 @ w2.T
    ref2 = jax.nn.sigmoid(c2 @ c2.T)

    adj2 = jax.block_until_ready(decoder_forward(x2, w2))
    assert adj2.shape == (N2, N2)
    assert jnp.allclose(adj2, ref2, atol=3e-2, rtol=0.0)

    # Force the streaming fallback path (coverage of the non-resident specs).
    adj2s = jax.block_until_ready(
        decoder_forward(x2, w2, max_resident_bytes=0))
    assert jnp.allclose(adj2s, ref2, atol=3e-2, rtol=0.0)

    print("KERNEL_OK")
</pallas_src>

<mosaic_0001>
module attributes {stable_mosaic.version = 11 : i64} {
  func.func @_linear_kernel(%arg0: i32, %arg1: memref<128x128xf32, #tpu.memory_space<vmem>>, %arg2: memref<128x128xf32, #tpu.memory_space<vmem>>, %arg3: memref<128x128xf32, #tpu.memory_space<vmem>>) attributes {dimension_semantics = [#tpu.dimension_semantics<parallel>], iteration_bounds = array<i64: 1>, scalar_prefetch = 0 : i64, scratch_operands = 0 : i64, tpu.core_type = #tpu.core_type<tc>, window_params = [{transform_indices = @transform_0, window_bounds = array<i64: 128, 128>}, {pipeline_mode = #tpu.pipeline_mode<synchronous>, transform_indices = @transform_1, window_bounds = array<i64: 128, 128>}, {transform_indices = @transform_2, window_bounds = array<i64: 128, 128>}]} {
    %c0 = arith.constant 0 : index
    %c0_0 = arith.constant 0 : index
    %0 = vector.load %arg1[%c0, %c0_0] : memref<128x128xf32, #tpu.memory_space<vmem>>, vector<128x128xf32>
    %c0_1 = arith.constant 0 : index
    %c0_2 = arith.constant 0 : index
    %1 = vector.load %arg2[%c0_1, %c0_2] : memref<128x128xf32, #tpu.memory_space<vmem>>, vector<128x128xf32>
    %cst = arith.constant dense<0.000000e+00> : vector<128x128xf32>
    %2 = tpu.matmul %0, %1, %cst {dimension_numbers = #tpu.dot_dimension_numbers<[1], [1], [0], [0], [0, 0, 1, 0], [], []>} : vector<128x128xf32>, vector<128x128xf32>, vector<128x128xf32> -> vector<128x128xf32>
    %c0_3 = arith.constant 0 : index
    %c0_4 = arith.constant 0 : index
    %3 = vector.load %arg3[%c0_3, %c0_4] : memref<128x128xf32, #tpu.memory_space<vmem>>, vector<128x128xf32>
    tpu.vector_store %arg3[%c0_3, %c0_4], %2 {strides = array<i32>} : memref<128x128xf32, #tpu.memory_space<vmem>>, vector<128x128xf32>,
    return
  }
  func.func @transform_0(%arg0: i32) -> (i32, i32) {
    %c0_i32 = arith.constant 0 : i32
    %c0_i32_0 = arith.constant 0 : i32
    return %arg0, %c0_i32 : i32, i32
  }
  func.func @transform_1(%arg0: i32) -> (i32, i32) {
    %c0_i32 = arith.constant 0 : i32
    %c0_i32_0 = arith.constant 0 : i32
    %c0_i32_1 = arith.constant 0 : i32
    return %c0_i32, %c0_i32_0 : i32, i32
  }
  func.func @transform_2(%arg0: i32) -> (i32, i32) {
    %c0_i32 = arith.constant 0 : i32
    %c0_i32_0 = arith.constant 0 : i32
    return %arg0, %c0_i32 : i32, i32
  }
}

</mosaic_0001>

<llo_original>
// kernel: tpu_custom_call.1
$region0: #{tpu_custom_call.1}
  #allocation0 [shape = 'u32[]', space=smem, size = 0x4, offset = 0x4, fixed_abs, tag = 'smem constant byte address 0x4 - core index']
  #allocation1 [shape = 'u32[144,128]{1,0:T(1,128)}', space=vmem, size = 0x12000, scoped, tag = 'internal scratch']
  %s0 = inlined_call_operand.hbm [shape: f32[128,128], index: 0, kind: input, shape index: {}]
  %s1 = inlined_call_operand.hbm [shape: f32[128,128], index: 1, kind: input, shape index: {}]
  %s2 = inlined_call_operand.hbm [shape: f32[128,128], index: 2, kind: output, shape index: {}]
  %s3 = sld [smem:[#allocation0]]
  $region26: #{tpu_custom_call.1} parent=0
    _
  %s5 = ssub.s32 1, %s3
  %s6 = scalar_select 0, %s5, %s3
  $region1: #{tpu_custom_call.1} parent=0
    #allocation2 [shape = 'u8[65536]{0}', space=vmem, size = 0x10000, scoped, tag = 'input window, operand 0, single buffered']
    #allocation3 [shape = 's32[1]{0}', space=sflag, size = 0x4, scoped, tag = 'scoped memory for tpu_custom_call.1']
    #allocation4 [shape = 's32[1]{0}', space=sflag, size = 0x4, scoped, tag = 'scoped memory for tpu_custom_call.1']
    #allocation5 [shape = 'u8[65536]{0}', space=vmem, size = 0x10000, scoped, tag = 'input window, operand 1, single buffered']
    #allocation6 [shape = 's32[1]{0}', space=sflag, size = 0x4, scoped, tag = 'scoped memory for tpu_custom_call.1']
    #allocation7 [shape = 'u8[65536]{0}', space=vmem, size = 0x10000, scoped, tag = 'output window, operand 0, single buffered']
    %7 = vsyncpa [#allocation3], 0
    %8 = vsyncpa [#allocation6], 0
    %9 = vsyncpa [#allocation4], 0
    // Predicated region
    $region2: #{tpu_custom_call.1} parent=1 // pred_check
      _
    $region3: #{tpu_custom_call.1} parent=1 // pred_check_branch
      %11 = sbr.rel (0) target = $region5
    $region4: #{tpu_custom_call.1} parent=1 // pred_region
      %s13 = ssub.s32 2048, 2048
      %14 = vsyncadd [#allocation3], %s13
      %s15 = sshll.u32 [#allocation2], 4
      %s16 = int_to_ptr.vmem [resolvable:$true] %s15
      %21 = dma.hbm_to_vmem [thread:$0]  %s0, 2048, %s16, [#allocation3], 128, 128, 8
    $region5: #{tpu_custom_call.1} parent=1 // pred_fallthru
      _
    // Predicated region
    $region6: #{tpu_custom_call.1} parent=1 // pred_check
      _
    $region7: #{tpu_custom_call.1} parent=1 // pred_check_branch
      %23 = sbr.rel (0) target = $region9
    $region8: #{tpu_custom_call.1} parent=1 // pred_region
      %s25 = ssub.s32 2048, 2048
      %26 = vsyncadd [#allocation6], %s25
      %s27 = sshll.u32 [#allocation5], 4
      %s28 = int_to_ptr.vmem [resolvable:$true] %s27
      %33 = dma.hbm_to_vmem [thread:$0]  %s1, 2048, %s28, [#allocation6], 128, 128, 8
    $region9: #{tpu_custom_call.1} parent=1 // pred_fallthru
      _
    // Predicated region
    $region10: #{tpu_custom_call.1} parent=1 // pred_check
      _
    $region11: #{tpu_custom_call.1} parent=1 // pred_check_branch
      %35 = sbr.rel (0) target = $region13
    $region12: #{tpu_custom_call.1} parent=1 // pred_region
      %36 = dma.done [#allocation3], 2048
    $region13: #{tpu_custom_call.1} parent=1 // pred_fallthru
      _
    // Predicated region
    $region14: #{tpu_custom_call.1} parent=1 // pred_check
      _
    $region15: #{tpu_custom_call.1} parent=1 // pred_check_branch
      %38 = sbr.rel (0) target = $region17
    $region16: #{tpu_custom_call.1} parent=1 // pred_region
      %39 = dma.done [#allocation6], 2048
    $region17: #{tpu_custom_call.1} parent=1 // pred_fallthru
      _
    %v40 = vld [vmem:[#allocation2] sm:$0xff]
    %v41 = vld [vmem:[#allocation2 + $0x8] sm:$0xff]
    %v42 = vld [vmem:[#allocation2 + $0x10] sm:$0xff]
    %v43 = vld [vmem:[#allocation2 + $0x18] sm:$0xff]
    %v44 = vld [vmem:[#allocation2 + $0x20] sm:$0xff]
    %v45 = vld [vmem:[#allocation2 + $0x28] sm:$0xff]
    %v46 = vld [vmem:[#allocation2 + $0x30] sm:$0xff]
    %v47 = vld [vmem:[#allocation2 + $0x38] sm:$0xff]
    %v48 = vld [vmem:[#allocation2 + $0x40] sm:$0xff]
    %v49 = vld [vmem:[#allocation2 + $0x48] sm:$0xff]
    %v50 = vld [vmem:[#allocation2 + $0x50] sm:$0xff]
    %v51 = vld [vmem:[#allocation2 + $0x58] sm:$0xff]
    %v52 = vld [vmem:[#allocation2 + $0x60] sm:$0xff]
    %v53 = vld [vmem:[#allocation2 + $0x68] sm:$0xff]
    %v54 = vld [vmem:[#allocation2 + $0x70] sm:$0xff]
    %v55 = vld [vmem:[#allocation2 + $0x78] sm:$0xff]
    %v56 = vld [vmem:[#allocation5] sm:$0xff]
    %v57 = vld [vmem:[#allocation5 + $0x8] sm:$0xff]
    %v58 = vld [vmem:[#allocation5 + $0x10] sm:$0xff]
    %v59 = vld [vmem:[#allocation5 + $0x18] sm:$0xff]
    %v60 = vld [vmem:[#allocation5 + $0x20] sm:$0xff]
    %v61 = vld [vmem:[#allocation5 + $0x28] sm:$0xff]
    %v62 = vld [vmem:[#allocation5 + $0x30] sm:$0xff]
    %v63 = vld [vmem:[#allocation5 + $0x38] sm:$0xff]
    %v64 = vld [vmem:[#allocation5 + $0x40] sm:$0xff]
    %v65 = vld [vmem:[#allocation5 + $0x48] sm:$0xff]
    %v66 = vld [vmem:[#allocation5 + $0x50] sm:$0xff]
    %v67 = vld [vmem:[#allocation5 + $0x58] sm:$0xff]
    %v68 = vld [vmem:[#allocation5 + $0x60] sm:$0xff]
    %v69 = vld [vmem:[#allocation5 + $0x68] sm:$0xff]
    %v70 = vld [vmem:[#allocation5 + $0x70] sm:$0xff]
    %v71 = vld [vmem:[#allocation5 + $0x78] sm:$0xff]
    %72 = vmatprep.subr.mxu0 0.0
    %73 = vmatpush1.xpose.msra.mxu0 %v71
    %74 = vmatprep.subr.mxu0 0.0
    %75 = vmatpush1.xpose.msra.mxu0 %v70
    %76 = vmatprep.subr.mxu0 0.0
    %77 = vmatpush1.xpose.msra.mxu0 %v69
    %78 = vmatprep.subr.mxu0 0.0
    %79 = vmatpush1.xpose.msra.mxu0 %v68
    %80 = vmatprep.subr.mxu0 0.0
    %81 = vmatpush1.xpose.msra.mxu0 %v67
    %82 = vmatprep.subr.mxu0 0.0
    %83 = vmatpush1.xpose.msra.mxu0 %v66
    %84 = vmatprep.subr.mxu0 0.0
    %85 = vmatpush1.xpose.msra.mxu0 %v65
    %86 = vmatprep.subr.mxu0 0.0
    %87 = vmatpush1.xpose.msra.mxu0 %v64
    %88 = vmatprep.subr.mxu0 0.0
    %89 = vmatpush1.xpose.msra.mxu0 %v63
    %90 = vmatprep.subr.mxu0 0.0
    %91 = vmatpush1.xpose.msra.mxu0 %v62
    %92 = vmatprep.subr.mxu0 0.0
    %93 = vmatpush1.xpose.msra.mxu0 %v61
    %94 = vmatprep.subr.mxu0 0.0
    %95 = vmatpush1.xpose.msra.mxu0 %v60
    %96 = vmatprep.subr.mxu0 0.0
    %97 = vmatpush1.xpose.msra.mxu0 %v59
    %98 = vmatprep.subr.mxu0 0.0
    %99 = vmatpush1.xpose.msra.mxu0 %v58
    %100 = vmatprep.subr.mxu0 0.0
    %101 = vmatpush1.xpose.msra.mxu0 %v57
    %102 = vmatprep.subr.mxu0 0.0
    %103 = vmatpush1.xpose.msra.mxu0 %v56
    %104 = vmatprep.subr.mxu0 0.0
    %105 = vmatpush2.xpose.msra.mxu0 0.0
    %106 = vmatprep.subr.mxu0 0.0
    %107 = vmatpush2.xpose.msra.mxu0 0.0
    %108 = vmatprep.subr.mxu0 0.0
    %109 = vmatpush2.xpose.msra.mxu0 0.0
    %110 = vmatprep.subr.mxu0 0.0
    %111 = vmatpush2.xpose.msra.mxu0 0.0
    %112 = vmatprep.subr.mxu0 0.0
    %113 = vmatpush2.xpose.msra.mxu0 0.0
    %114 = vmatprep.subr.mxu0 0.0
    %115 = vmatpush2.xpose.msra.mxu0 0.0
    %116 = vmatprep.subr.mxu0 0.0
    %117 = vmatpush2.xpose.msra.mxu0 0.0
    %118 = vmatprep.subr.mxu0 0.0
    %119 = vmatpush2.xpose.msra.mxu0 0.0
    %120 = vmatprep.subr.mxu0 0.0
    %121 = vmatpush2.xpose.msra.mxu0 0.0
    %122 = vmatprep.subr.mxu0 0.0
    %123 = vmatpush2.xpose.msra.mxu0 0.0
    %124 = vmatprep.subr.mxu0 0.0
    %125 = vmatpush2.xpose.msra.mxu0 0.0
    %126 = vmatprep.subr.mxu0 0.0
    %127 = vmatpush2.xpose.msra.mxu0 0.0
    %128 = vmatprep.subr.mxu0 0.0
    %129 = vmatpush2.xpose.msra.mxu0 0.0
    %130 = vmatprep.subr.mxu0 0.0
    %131 = vmatpush2.xpose.msra.mxu0 0.0
    %132 = vmatprep.subr.mxu0 0.0
    %133 = vmatpush2.xpose.msra.mxu0 0.0
    %134 = vmatprep.subr.mxu0 0.0
    %135 = vmatpush2.xpose.msra.mxu0 0.0
    %136 = vmatprep.mubr.f32.mxu0 0.0
    %137 = vmatmul.mubr.f32.gmra.mxu0 %v40
    %v138 = vpop.f32.mrf.mxu0
    %v139 = vadd.f32 0.0, %v138
    %v140 = vpop.f32.mrf.mxu0
    %141 = vmatprep.mubr.f32.mxu0 0.0
    %142 = vmatmul.mubr.f32.gmra.mxu0 %v41
    %v143 = vpop.f32.mrf.mxu0
    %v144 = vadd.f32 0.0, %v143
    %v145 = vpop.f32.mrf.mxu0
    %146 = vmatprep.mubr.f32.mxu0 0.0
    %147 = vmatmul.mubr.f32.gmra.mxu0 %v42
    %v148 = vpop.f32.mrf.mxu0
    %v149 = vadd.f32 0.0, %v148
    %v150 = vpop.f32.mrf.mxu0
    %151 = vmatprep.mubr.f32.mxu0 0.0
    %152 = vmatmul.mubr.f32.gmra.mxu0 %v43
    %v153 = vpop.f32.mrf.mxu0
    %v154 = vadd.f32 0.0, %v153
    %v155 = vpop.f32.mrf.mxu0
    %156 = vmatprep.mubr.f32.mxu0 0.0
    %157 = vmatmul.mubr.f32.gmra.mxu0 %v44
    %v158 = vpop.f32.mrf.mxu0
    %v159 = vadd.f32 0.0, %v158
    %v160 = vpop.f32.mrf.mxu0
    %161 = vmatprep.mubr.f32.mxu0 0.0
    %162 = vmatmul.mubr.f32.gmra.mxu0 %v45
    %v163 = vpop.f32.mrf.mxu0
    %v164 = vadd.f32 0.0, %v163
    %v165 = vpop.f32.mrf.mxu0
    %166 = vmatprep.mubr.f32.mxu0 0.0
    %167 = vmatmul.mubr.f32.gmra.mxu0 %v46
    %v168 = vpop.f32.mrf.mxu0
    %v169 = vadd.f32 0.0, %v168
    %v170 = vpop.f32.mrf.mxu0
    %171 = vmatprep.mubr.f32.mxu0 0.0
    %172 = vmatmul.mubr.f32.gmra.mxu0 %v47
    %v173 = vpop.f32.mrf.mxu0
    %v174 = vadd.f32 0.0, %v173
    %v175 = vpop.f32.mrf.mxu0
    %176 = vmatprep.mubr.f32.mxu0 0.0
    %177 = vmatmul.mubr.f32.gmra.mxu0 %v48
    %v178 = vpop.f32.mrf.mxu0
    %v179 = vadd.f32 0.0, %v178
    %v180 = vpop.f32.mrf.mxu0
    %181 = vmatprep.mubr.f32.mxu0 0.0
    %182 = vmatmul.mubr.f32.gmra.mxu0 %v49
    %v183 = vpop.f32.mrf.mxu0
    %v184 = vadd.f32 0.0, %v183
    %v185 = vpop.f32.mrf.mxu0
    %186 = vmatprep.mubr.f32.mxu0 0.0
    %187 = vmatmul.mubr.f32.gmra.mxu0 %v50
    %v188 = vpop.f32.mrf.mxu0
    %v189 = vadd.f32 0.0, %v188
    %v190 = vpop.f32.mrf.mxu0
    %191 = vmatprep.mubr.f32.mxu0 0.0
    %192 = vmatmul.mubr.f32.gmra.mxu0 %v51
    %v193 = vpop.f32.mrf.mxu0
    %v194 = vadd.f32 0.0, %v193
    %v195 = vpop.f32.mrf.mxu0
    %196 = vmatprep.mubr.f32.mxu0 0.0
    %197 = vmatmul.mubr.f32.gmra.mxu0 %v52
    %v198 = vpop.f32.mrf.mxu0
    %v199 = vadd.f32 0.0, %v198
    %v200 = vpop.f32.mrf.mxu0
    %201 = vmatprep.mubr.f32.mxu0 0.0
    %202 = vmatmul.mubr.f32.gmra.mxu0 %v53
    %v203 = vpop.f32.mrf.mxu0
    %v204 = vadd.f32 0.0, %v203
    %v205 = vpop.f32.mrf.mxu0
    %206 = vmatprep.mubr.f32.mxu0 0.0
    %207 = vmatmul.mubr.f32.gmra.mxu0 %v54
    %v208 = vpop.f32.mrf.mxu0
    %v209 = vadd.f32 0.0, %v208
    %v210 = vpop.f32.mrf.mxu0
    %211 = vmatprep.mubr.f32.mxu0 0.0
    %212 = vmatmul.mubr.f32.gmra.mxu0 %v55
    %v213 = vpop.f32.mrf.mxu0
    %v214 = vadd.f32 0.0, %v213
    %v215 = vpop.f32.mrf.mxu0
    %216 = vdwg.mxu0
    %217 = vst [vmem:[#allocation7] sm:$0xff] %v139
    %218 = vst [vmem:[#allocation7 + $0x8] sm:$0xff] %v144
    %219 = vst [vmem:[#allocation7 + $0x10] sm:$0xff] %v149
    %220 = vst [vmem:[#allocation7 + $0x18] sm:$0xff] %v154
    %221 = vst [vmem:[#allocation7 + $0x20] sm:$0xff] %v159
    %222 = vst [vmem:[#allocation7 + $0x28] sm:$0xff] %v164
    %223 = vst [vmem:[#allocation7 + $0x30] sm:$0xff] %v169
    %224 = vst [vmem:[#allocation7 + $0x38] sm:$0xff] %v174
    %225 = vst [vmem:[#allocation7 + $0x40] sm:$0xff] %v179
    %226 = vst [vmem:[#allocation7 + $0x48] sm:$0xff] %v184
    %227 = vst [vmem:[#allocation7 + $0x50] sm:$0xff] %v189
    %228 = vst [vmem:[#allocation7 + $0x58] sm:$0xff] %v194
    %229 = vst [vmem:[#allocation7 + $0x60] sm:$0xff] %v199
    %230 = vst [vmem:[#allocation7 + $0x68] sm:$0xff] %v204
    %231 = vst [vmem:[#allocation7 + $0x70] sm:$0xff] %v209
    %232 = vst [vmem:[#allocation7 + $0x78] sm:$0xff] %v214
    // Predicated region
    $region18: #{tpu_custom_call.1} parent=1 // pred_check
      _
    $region19: #{tpu_custom_call.1} parent=1 // pred_check_branch
      %234 = sbr.rel (0) target = $region21
    $region20: #{tpu_custom_call.1} parent=1 // pred_region
      %s236 = ssub.s32 2048, 2048
      %237 = vsyncadd [#allocation4], %s236
      %s238 = sshll.u32 [#allocation7], 4
      %s239 = int_to_ptr.vmem [resolvable:$true] %s238
      %244 = dma.vmem_to_hbm [thread:$0]  %s239, 2048, %s2, [#allocation4], 128, 128, 8
    $region21: #{tpu_custom_call.1} parent=1 // pred_fallthru
      _
    // Predicated region
    $region22: #{tpu_custom_call.1} parent=1 // pred_check
      _
    $region23: #{tpu_custom_call.1} parent=1 // pred_check_branch
      %246 = sbr.rel (0) target = $region25
    $region24: #{tpu_custom_call.1} parent=1 // pred_region
      %247 = dma.done [#allocation4], 2048
    $region25: #{tpu_custom_call.1} parent=1 // pred_fallthru
      _
    %248 = vsyncpa [#allocation3], 1
    %249 = vsyncpa [#allocation6], 1
    %250 = vsyncpa [#allocation4], 1

</llo_original>
